<compile_context>
chip_gen: v6e
topology: v6e:2x2x1
jax: 0.10.0
libtpu: 0.0.40
codegen_flags: <defaults>
</compile_context>

<pallas_src>
import functools

import jax
import jax.numpy as jnp
from jax.experimental import pallas as pl
from jax.experimental.pallas import tpu as pltpu

_MIB = 1024 * 1024
_IGNORE_INDEX = -100  # PyTorch nn.CrossEntropyLoss default


def _ce_kernel(logits_ref, tgt_ref, out_ref, *, n_valid, tm, ignore_index):
    """One row-tile of cross-entropy: writes (block_loss_sum, block_count) partials."""
    i = pl.program_id(0)

    raw = logits_ref[...]                                   # (TM, C), native dtype
    tgt = tgt_ref[...]                                      # (TM, 1), int32

    # Target logit selected straight from the input tile (single streaming pass;
    # keeps the f32 `shifted` temp below with a single consumer).
    col_ids = jax.lax.broadcasted_iota(jnp.int32, raw.shape, 1)
    tgt_logit = jnp.sum(
        jnp.where(col_ids == tgt, raw, jnp.zeros_like(raw)).astype(jnp.float32),
        axis=-1, keepdims=True)                             # (TM, 1) f32

    # Numerically stable log-sum-exp in f32.
    logits = raw.astype(jnp.float32)                        # (TM, C)
    row_max = jnp.max(logits, axis=-1, keepdims=True)       # (TM, 1)
    sumexp = jnp.sum(jnp.exp(logits - row_max), axis=-1, keepdims=True)
    per_row = jnp.log(sumexp) + row_max - tgt_logit         # (TM, 1)

    # Mask rows past the true N (the ragged edge block reads unspecified data;
    # jnp.where selects it away before accumulation) and ignored targets.
    row_ids = i * tm + jax.lax.broadcasted_iota(jnp.int32, per_row.shape, 0)
    keep = jnp.logical_and(row_ids < n_valid, tgt != ignore_index)   # (TM, 1) bool
    block_sum = jnp.sum(jnp.where(keep, per_row, 0.0))
    block_cnt = jnp.sum(keep.astype(jnp.float32))

    # Per-block partials -> this step's private (8, 128) output block:
    # [0, 0] = loss sum, [0, 1] = row count, zeros elsewhere.  Each grid step owns
    # a distinct output block, so the axis can be 'parallel' (megacore on v7x).
    r_ids = jax.lax.broadcasted_iota(jnp.int32, out_ref.shape, 0)
    c_ids = jax.lax.broadcasted_iota(jnp.int32, out_ref.shape, 1)
    first_row = r_ids == 0
    out_ref[...] = jnp.where(
        jnp.logical_and(first_row, c_ids == 0), block_sum,
        jnp.where(jnp.logical_and(first_row, c_ids == 1), block_cnt, 0.0))


def _round_down(x, m):
    return (x // m) * m


def classification_loss(logits, targets, ignore_index=_IGNORE_INDEX):
    """Cross-entropy (reduction='mean') over (N, C) logits and (N,) int targets."""
    n, c = logits.shape
    itemsize = jnp.dtype(logits.dtype).itemsize

    # --- generation-aware row-tile sizing ------------------------------------
    try:
        vmem_cap = int(pltpu.get_tpu_info().vmem_capacity_bytes)
    except Exception:  # interpret mode / unknown chip
        vmem_cap = 64 * _MIB
    vmem_cap = max(64 * _MIB, min(vmem_cap, 128 * _MIB))    # per-core physical range

    # Per-row VMEM footprint: double-buffered native-dtype logits tile, ~5
    # (TM, C)-sized f32/i32 temporaries live inside the kernel (conservative),
    # and the (TM, 1) int32 target tile which pads to 128 lanes (512 B/row) x2.
    per_row_bytes = c * (2 * itemsize + 5 * 4) + 2 * 512 + 16
    budget = min((vmem_cap * 9) // 16, 48 * _MIB)           # ~36 MiB v7x, 48 MiB v5e/v6e
    tm = max(16, _round_down(budget // per_row_bytes, 16))  # multiple of 16 (bf16 packing)
    vmem_limit = int(min((vmem_cap * 3) // 4, (budget * 3) // 2))  # headroom below physical

    # --- batch handling (no full-array padding) -------------------------------
    n_valid = n
    tgt2d = targets.astype(jnp.int32).reshape(n, 1)
    if n < 16:
        # Tiny batch: pad up to one 16-row tile (negligible at this size).
        pad = 16 - n
        logits = jnp.pad(logits, ((0, pad), (0, 0)))
        tgt2d = jnp.pad(tgt2d, ((0, pad), (0, 0)))
        n = 16
    tm = min(tm, _round_down(n, 16))
    nb = pl.cdiv(n, tm)             # ragged edge block handled by the in-kernel mask

    kernel = functools.partial(_ce_kernel, n_valid=n_valid, tm=tm,
                               ignore_index=ignore_index)

    cost = pl.CostEstimate(
        flops=int(6 * n_valid * c),
        transcendentals=int(n_valid * c),
        bytes_accessed=int(n_valid * c * itemsize + n_valid * 4 + nb * 8 * 128 * 4),
    )

    partials = pl.pallas_call(
        kernel,
        out_shape=jax.ShapeDtypeStruct((nb * 8, 128), jnp.float32),
        grid=(nb,),
        in_specs=[
            pl.BlockSpec((tm, c), lambda i: (i, 0)),   # logits row tile (native dtype)
            pl.BlockSpec((tm, 1), lambda i: (i, 0)),   # matching target tile
        ],
        out_specs=pl.BlockSpec((8, 128), lambda i: (i, 0)),   # per-block partials
        compiler_params=pltpu.CompilerParams(
            dimension_semantics=("parallel",),         # independent blocks -> megacore
            vmem_limit_bytes=vmem_limit,
        ),
        cost_estimate=cost,
    )(logits, tgt2d)

    partials = partials.reshape(nb, 8, 128)
    loss_sum = jnp.sum(partials[:, 0, 0])
    count = jnp.sum(partials[:, 0, 1])
    return loss_sum / count                            # reduction='mean' over non-ignored


if __name__ == "__main__":
    key = jax.random.PRNGKey(0)

    def _ref_loss(lg, tg, ignore_index=_IGNORE_INDEX):
        lg = lg.astype(jnp.float32)
        lse = jax.scipy.special.logsumexp(lg, axis=-1)
        tg_safe = jnp.where(tg == ignore_index, 0, tg)
        per = lse - lg[jnp.arange(lg.shape[0]), tg_safe]
        keep = (tg != ignore_index).astype(jnp.float32)
        return jnp.sum(per * keep) / jnp.sum(keep)

    ks = jax.random.split(key, 10)

    # Case 1: tiny batch (padded to one 16-row tile internally).
    N1, C1 = 8, 32
    logits1 = jax.random.normal(ks[0], (N1, C1), dtype=jnp.float32)
    targets1 = jax.random.randint(ks[1], (N1,), 0, C1, dtype=jnp.int32)
    loss1 = jax.block_until_ready(classification_loss(logits1, targets1))
    assert jnp.allclose(loss1, _ref_loss(logits1, targets1), atol=1e-5, rtol=1e-5), \
        (loss1, _ref_loss(logits1, targets1))

    # Case 2: batch not a multiple of 8.
    N2, C2 = 10, 48
    logits2 = jax.random.normal(ks[2], (N2, C2), dtype=jnp.float32)
    targets2 = jax.random.randint(ks[3], (N2,), 0, C2, dtype=jnp.int32)
    loss2 = jax.block_until_ready(classification_loss(logits2, targets2))
    assert jnp.allclose(loss2, _ref_loss(logits2, targets2), atol=1e-5, rtol=1e-5), \
        (loss2, _ref_loss(logits2, targets2))

    # Case 3: N not tile-aligned -> exercises the no-pad ragged edge block path.
    N3, C3 = 200, 128
    logits3 = jax.random.normal(ks[4], (N3, C3), dtype=jnp.float32)
    targets3 = jax.random.randint(ks[5], (N3,), 0, C3, dtype=jnp.int32)
    loss3 = jax.block_until_ready(classification_loss(logits3, targets3))
    assert jnp.allclose(loss3, _ref_loss(logits3, targets3), atol=1e-5, rtol=1e-5), \
        (loss3, _ref_loss(logits3, targets3))

    # Case 4: ignore_index=-100 rows excluded from both the sum and the mean count.
    N4, C4 = 24, 16
    logits4 = jax.random.normal(ks[6], (N4, C4), dtype=jnp.float32)
    targets4 = jax.random.randint(ks[7], (N4,), 0, C4, dtype=jnp.int32)
    targets4 = targets4.at[3].set(-100).at[17].set(-100)
    loss4 = jax.block_until_ready(classification_loss(logits4, targets4))
    assert jnp.allclose(loss4, _ref_loss(logits4, targets4), atol=1e-5, rtol=1e-5), \
        (loss4, _ref_loss(logits4, targets4))

    # Case 5: bf16 logits stay bf16 over HBM and are upcast inside the kernel.
    N5, C5 = 48, 64
    logits5 = jax.random.normal(ks[8], (N5, C5), dtype=jnp.float32).astype(jnp.bfloat16)
    targets5 = jax.random.randint(ks[9], (N5,), 0, C5, dtype=jnp.int32)
    loss5 = jax.block_until_ready(classification_loss(logits5, targets5))
    assert jnp.allclose(loss5, _ref_loss(logits5, targets5), atol=5e-3, rtol=5e-3), \
        (loss5, _ref_loss(logits5, targets5))

    print("KERNEL_OK")
</pallas_src>

<mosaic_0001>
module attributes {stable_mosaic.version = 11 : i64} {
  func.func @_ce_kernel(%arg0: i32, %arg1: memref<16x32xf32, #tpu.memory_space<vmem>>, %arg2: memref<16x1xi32, #tpu.memory_space<vmem>>, %arg3: memref<8x128xf32, #tpu.memory_space<vmem>>) attributes {dimension_semantics = [#tpu.dimension_semantics<parallel>], iteration_bounds = array<i64: 1>, scalar_prefetch = 0 : i64, scratch_operands = 0 : i64, tpu.core_type = #tpu.core_type<tc>, window_params = [{transform_indices = @transform_0, window_bounds = array<i64: 16, 32>}, {transform_indices = @transform_1, window_bounds = array<i64: 16, 1>}, {transform_indices = @transform_2, window_bounds = array<i64: 8, 128>}]} {
    %c0 = arith.constant 0 : index
    %c0_0 = arith.constant 0 : index
    %0 = vector.load %arg1[%c0, %c0_0] : memref<16x32xf32, #tpu.memory_space<vmem>>, vector<16x32xf32>
    %c0_1 = arith.constant 0 : index
    %c0_2 = arith.constant 0 : index
    %1 = vector.load %arg2[%c0_1, %c0_2] : memref<16x1xi32, #tpu.memory_space<vmem>>, vector<16x1xi32>
    %2 = tpu.iota {dimensions = array<i32: 1>} : vector<16x32xi32>
    %3 = vector.broadcast %1 : vector<16x1xi32> to vector<16x32xi32>
    %4 = arith.cmpi eq, %2, %3 : vector<16x32xi32>
    %cst = arith.constant 0.000000e+00 : f32
    %5 = vector.broadcast %cst : f32 to vector<16x32xf32>
    %6 = arith.select %4, %0, %5 : vector<16x32xi1>, vector<16x32xf32>
    %cst_3 = arith.constant dense<0.000000e+00> : vector<16xf32>
    %7 = vector.multi_reduction <add>, %6, %cst_3 [1] : vector<16x32xf32> to vector<16xf32>
    %8 = vector.shape_cast %7 : vector<16xf32> to vector<16x1xf32>
    %cst_4 = arith.constant dense<0xFF800000> : vector<16xf32>
    %9 = vector.multi_reduction <maximumf>, %0, %cst_4 [1] : vector<16x32xf32> to vector<16xf32>
    %10 = vector.shape_cast %9 : vector<16xf32> to vector<16x1xf32>
    %11 = vector.broadcast %10 : vector<16x1xf32> to vector<16x32xf32>
    %12 = arith.subf %0, %11 : vector<16x32xf32>
    %13 = math.exp %12 : vector<16x32xf32>
    %cst_5 = arith.constant dense<0.000000e+00> : vector<16xf32>
    %14 = vector.multi_reduction <add>, %13, %cst_5 [1] : vector<16x32xf32> to vector<16xf32>
    %15 = vector.shape_cast %14 : vector<16xf32> to vector<16x1xf32>
    %16 = math.log %15 : vector<16x1xf32>
    %17 = arith.addf %16, %10 : vector<16x1xf32>
    %18 = arith.subf %17, %8 : vector<16x1xf32>
    %c16_i32 = arith.constant 16 : i32
    %19 = arith.muli %arg0, %c16_i32 : i32
    %20 = tpu.iota {dimensions = array<i32: 0>} : vector<16x1xi32>
    %21 = vector.broadcast %19 : i32 to vector<16x1xi32>
    %22 = arith.addi %21, %20 : vector<16x1xi32>
    %c8_i32 = arith.constant 8 : i32
    %23 = vector.broadcast %c8_i32 : i32 to vector<16x1xi32>
    %24 = arith.cmpi slt, %22, %23 : vector<16x1xi32>
    %c-100_i32 = arith.constant -100 : i32
    %25 = vector.broadcast %c-100_i32 : i32 to vector<16x1xi32>
    %26 = arith.cmpi ne, %1, %25 : vector<16x1xi32>
    %27 = arith.andi %24, %26 : vector<16x1xi1>
    %cst_6 = arith.constant 0.000000e+00 : f32
    %28 = vector.broadcast %cst_6 : f32 to vector<16x1xf32>
    %29 = arith.select %27, %18, %28 : vector<16x1xi1>, vector<16x1xf32>
    %30 = vector.shape_cast %29 : vector<16x1xf32> to vector<1x16x1xf32>
    %cst_7 = arith.constant dense<0.000000e+00> : vector<1xf32>
    %31 = vector.multi_reduction <add>, %30, %cst_7 [1, 2] : vector<1x16x1xf32> to vector<1xf32>
    %32 = vector.shape_cast %31 : vector<1xf32> to vector<1x1x1xf32>
    %33 = vector.extract %32[0, 0, 0] : f32 from vector<1x1x1xf32>
    %34 = arith.extui %27 : vector<16x1xi1> to vector<16x1xi32>
    %35 = arith.sitofp %34 : vector<16x1xi32> to vector<16x1xf32>
    %36 = vector.shape_cast %35 : vector<16x1xf32> to vector<1x16x1xf32>
    %cst_8 = arith.constant dense<0.000000e+00> : vector<1xf32>
    %37 = vector.multi_reduction <add>, %36, %cst_8 [1, 2] : vector<1x16x1xf32> to vector<1xf32>
    %38 = vector.shape_cast %37 : vector<1xf32> to vector<1x1x1xf32>
    %39 = vector.extract %38[0, 0, 0] : f32 from vector<1x1x1xf32>
    %40 = tpu.iota {dimensions = array<i32: 0>} : vector<8x128xi32>
    %41 = tpu.iota {dimensions = array<i32: 1>} : vector<8x128xi32>
    %c0_i32 = arith.constant 0 : i32
    %42 = vector.broadcast %c0_i32 : i32 to vector<8x128xi32>
    %43 = arith.cmpi eq, %40, %42 : vector<8x128xi32>
    %c0_i32_9 = arith.constant 0 : i32
    %44 = vector.broadcast %c0_i32_9 : i32 to vector<8x128xi32>
    %45 = arith.cmpi eq, %41, %44 : vector<8x128xi32>
    %46 = arith.andi %43, %45 : vector<8x128xi1>
    %c1_i32 = arith.constant 1 : i32
    %47 = vector.broadcast %c1_i32 : i32 to vector<8x128xi32>
    %48 = arith.cmpi eq, %41, %47 : vector<8x128xi32>
    %49 = arith.andi %43, %48 : vector<8x128xi1>
    %cst_10 = arith.constant 0.000000e+00 : f32
    %50 = vector.broadcast %39 : f32 to vector<8x128xf32>
    %51 = vector.broadcast %cst_10 : f32 to vector<8x128xf32>
    %52 = arith.select %49, %50, %51 : vector<8x128xi1>, vector<8x128xf32>
    %53 = vector.broadcast %33 : f32 to vector<8x128xf32>
    %54 = arith.select %46, %53, %52 : vector<8x128xi1>, vector<8x128xf32>
    %c0_11 = arith.constant 0 : index
    %c0_12 = arith.constant 0 : index
    %55 = vector.load %arg3[%c0_11, %c0_12] : memref<8x128xf32, #tpu.memory_space<vmem>>, vector<8x128xf32>
    tpu.vector_store %arg3[%c0_11, %c0_12], %54 {strides = array<i32>} : memref<8x128xf32, #tpu.memory_space<vmem>>, vector<8x128xf32>,
    return
  }
  func.func @transform_0(%arg0: i32) -> (i32, i32) {
    %c0_i32 = arith.constant 0 : i32
    %c0_i32_0 = arith.constant 0 : i32
    return %arg0, %c0_i32 : i32, i32
  }
  func.func @transform_1(%arg0: i32) -> (i32, i32) {
    %c0_i32 = arith.constant 0 : i32
    %c0_i32_0 = arith.constant 0 : i32
    return %arg0, %c0_i32 : i32, i32
  }
  func.func @transform_2(%arg0: i32) -> (i32, i32) {
    %c0_i32 = arith.constant 0 : i32
    %c0_i32_0 = arith.constant 0 : i32
    return %arg0, %c0_i32 : i32, i32
  }
}

</mosaic_0001>

<llo_original>
// kernel: tpu_custom_call.1
$region0: #{tpu_custom_call.1}
  #allocation0 [shape = 'u32[]', space=smem, size = 0x4, offset = 0x4, fixed_abs, tag = 'smem constant byte address 0x4 - core index']
  #allocation1 [shape = 'u32[144,128]{1,0:T(1,128)}', space=vmem, size = 0x12000, scoped, tag = 'internal scratch']
  %s0 = inlined_call_operand.vmem [shape: f32[16,32], index: 0, kind: input, shape index: {}]
  %s1 = inlined_call_operand.vmem [shape: s32[16,1], index: 1, kind: input, shape index: {}]
  %s2 = inlined_call_operand.hbm [shape: f32[8,128], index: 2, kind: output, shape index: {}]
  %s3 = sld [smem:[#allocation0]]
  $region18: #{tpu_custom_call.1} parent=0
    _
  %s5 = ssub.s32 1, %s3
  %s6 = scalar_select 0, %s5, %s3
  $region1: #{tpu_custom_call.1} parent=0
    #allocation2 [shape = 'u8[4096]{0}', space=vmem, size = 0x1000, scoped, tag = 'output window, operand 0, single buffered']
    #allocation3 [shape = 's32[1]{0}', space=sflag, size = 0x4, scoped, tag = 'scoped memory for tpu_custom_call.1']
    %7 = vsyncpa [#allocation3], 0
    // Predicated region
    $region2: #{tpu_custom_call.1} parent=1 // pred_check
      _
    $region3: #{tpu_custom_call.1} parent=1 // pred_check_branch
      %9 = sbr.rel (0) target = $region5
    $region4: #{tpu_custom_call.1} parent=1 // pred_region
      _
    $region5: #{tpu_custom_call.1} parent=1 // pred_fallthru
      _
    // Predicated region
    $region6: #{tpu_custom_call.1} parent=1 // pred_check
      _
    $region7: #{tpu_custom_call.1} parent=1 // pred_check_branch
      %11 = sbr.rel (0) target = $region9
    $region8: #{tpu_custom_call.1} parent=1 // pred_region
      _
    $region9: #{tpu_custom_call.1} parent=1 // pred_fallthru
      _
    %v12 = vld [vmem:[%s0] sm:$0xff]
    %v13 = vld [vmem:[%s0 + $0x8] sm:$0xff]
    %v14 = vld [vmem:[%s1] sm:$0xff]
    %v15 = vld [vmem:[%s1 + $0x8] sm:$0xff]
    %v16 = vlaneseq
    %v17 = vand.u32 %v16, 127
    %18 = vset.pattern.permute.xlu0 0
    %19 = vperm.xlu0 %18, %v14
    %v20 = vpop.permute.xlu0 %19
    %21 = vset.pattern.permute.xlu0 0
    %22 = vperm.xlu0 %21, %v15
    %v23 = vpop.permute.xlu0 %22
    %vm24 = vcmp.eq.s32.totalorder %v17, %v20
    %vm25 = vcmp.eq.s32.totalorder %v17, %v23
    %v26 = vsel %vm24, %v12, 0.0
    %v27 = vsel %vm25, %v13, 0.0
    %vm28 = vcmask 261120
    %v29 = vsel %vm28, %v26, 0.0
    %30 = vadd.xlane.f32.xlu0 %v29
    %v31 = vpop.xlane.xlu0 %30
    %v32 = vsel %vm28, %v27, 0.0
    %33 = vadd.xlane.f32.xlu0 %v32
    %v34 = vpop.xlane.xlu0 %33
    %v35 = vsel %vm28, %v12, -inf
    %36 = vmax.xlane.f32.xlu0 %v35
    %v37 = vpop.xlane.xlu0 %36
    %v38 = vsel %vm28, %v13, -inf
    %39 = vmax.xlane.f32.xlu0 %v38
    %v40 = vpop.xlane.xlu0 %39
    %v41 = vsub.f32 %v12, %v37
    %v42 = vsub.f32 %v13, %v40
    %v43 = vmul.f32 %v41, 1.442695
    %v44 = vpow.pop %v43
    %v45 = vmul.f32 %v42, 1.442695
    %v46 = vpow.pop %v45
    %v47 = vsel %vm28, %v44, 0.0
    %48 = vadd.xlane.f32.xlu0 %v47
    %v49 = vpop.xlane.xlu0 %48
    %v50 = vsel %vm28, %v46, 0.0
    %51 = vadd.xlane.f32.xlu0 %v50
    %v52 = vpop.xlane.xlu0 %51
    %v53 = vlog2.pop %v49
    %v54 = vmul.f32 %v53, 0.6931472
    %v55 = vlog2.pop %v52
    %v56 = vmul.f32 %v55, 0.6931472
    %v57 = vadd.f32 %v54, %v37
    %v58 = vadd.f32 %v56, %v40
    %v59 = vsub.f32 %v57, %v31
    %v60 = vsub.f32 %v58, %v34
    %s61 = smul.u32 0, 16
    %v62 = vlaneseq
    %v63 = vshrl.u32 %v62, 7
    %v64 = vadd.s32 %v63, 8
    %v65 = vstv %s61
    %v66 = vadd.s32 %v65, %v63
    %v67 = vadd.s32 %v65, %v64
    %vm68 = vcmp.lt.s32.totalorder %v66, 8
    %vm69 = vcmp.lt.s32.totalorder %v67, 8
    %vm70 = vcmp.ne.s32.totalorder %v14, 4294967196
    %vm71 = vcmp.ne.s32.totalorder %v15, 4294967196
    %vm72 = vmand %vm68, %vm70
    %vm73 = vmand %vm69, %vm71
    %v74 = vsel %vm72, %v59, 0.0
    %v75 = vsel %vm73, %v60, 0.0
    %vm76 = vcmask 7168
    %v77 = vsel %vm76, %v74, 0.0
    %v78 = vsel %vm76, %v75, 0.0
    %v79 = vadd.f32 %v77, %v78
    %80 = vadd.xlane.f32.xlu0 %v79
    %v81 = vpop.xlane.xlu0 %80
    %v82 = vrot.slane %v81, 4
    %v83 = vadd.f32 %v81, %v82
    %v84 = vrot.slane %v83, 2
    %v85 = vadd.f32 %v83, %v84
    %v86 = vrot.slane %v85, 1
    %v87 = vadd.f32 %v85, %v86
    %s88 = vtos %v87
    %v89 = vsel %vm72, 1, 0
    %v90 = vsel %vm73, 1, 0
    %v91 = vcvt.s32.f32 %v89
    %v92 = vcvt.s32.f32 %v90
    %v93 = vsel %vm76, %v91, 0.0
    %v94 = vsel %vm76, %v92, 0.0
    %v95 = vadd.f32 %v93, %v94
    %96 = vadd.xlane.f32.xlu0 %v95
    %v97 = vpop.xlane.xlu0 %96
    %v98 = vrot.slane %v97, 4
    %v99 = vadd.f32 %v97, %v98
    %v100 = vrot.slane %v99, 2
    %v101 = vadd.f32 %v99, %v100
    %v102 = vrot.slane %v101, 1
    %v103 = vadd.f32 %v101, %v102
    %s104 = vtos %v103
    %vm105 = vcmp.eq.s32.totalorder %v63, 0
    %vm106 = vcmp.eq.s32.totalorder %v17, 0
    %vm107 = vmand %vm105, %vm106
    %vm108 = vcmp.eq.s32.totalorder %v17, 1
    %vm109 = vmand %vm105, %vm108
    %v110 = vstv %s104
    %v111 = vsel %vm109, %v110, 0.0
    %v112 = vstv %s88
    %v113 = vsel %vm107, %v112, %v111
    %114 = vst [vmem:[#allocation2] sm:$0xff] %v113
    // Predicated region
    $region10: #{tpu_custom_call.1} parent=1 // pred_check
      _
    $region11: #{tpu_custom_call.1} parent=1 // pred_check_branch
      %116 = sbr.rel (0) target = $region13
    $region12: #{tpu_custom_call.1} parent=1 // pred_region
      %s118 = ssub.s32 128, 128
      %119 = vsyncadd [#allocation3], %s118
      %s121 = sshll.u32 [#allocation2], 4
      %s122 = int_to_ptr.vmem [resolvable:$true] %s121
      %124 = dma.vmem_to_hbm [thread:$0]  %s122, 128, %s2, [#allocation3]
    $region13: #{tpu_custom_call.1} parent=1 // pred_fallthru
      _
    // Predicated region
    $region14: #{tpu_custom_call.1} parent=1 // pred_check
      _
    $region15: #{tpu_custom_call.1} parent=1 // pred_check_branch
      %126 = sbr.rel (0) target = $region17
    $region16: #{tpu_custom_call.1} parent=1 // pred_region
      %127 = dma.done [#allocation3], 128
    $region17: #{tpu_custom_call.1} parent=1 // pred_fallthru
      _
    %128 = vsyncpa [#allocation3], 1

</llo_original>
